<compile_context>
chip_gen: v7x
topology: tpu7x:2x2x1
jax: 0.10.0
libtpu: 0.0.40
codegen_flags: <defaults>
</compile_context>

<pallas_src>
import functools
import math

import jax
import jax.numpy as jnp
from jax.experimental import pallas as pl
from jax.experimental.pallas import tpu as pltpu


def _round_up(x, m):
    return (x + m - 1) // m * m


def _cdiv(a, b):
    return (a + b - 1) // b


def _vmem_capacity_bytes():
    try:
        return int(pltpu.get_tpu_info().vmem_capacity_bytes)
    except Exception:
        return 64 * 1024 * 1024        # conservative (v7x-sized) fallback


def _is_v5e():
    try:
        kind = jax.devices()[0].device_kind.lower()
    except Exception:
        return False
    return ("v5 lite" in kind) or ("v5e" in kind) or ("v5litepod" in kind)


def _face_loss_kernel(logits_ref, target_ref, loss_ref,
                      m_acc, l_acc, s_acc, pt_acc, *cache,
                      m1, m2, m3, scale, num_classes, block_c,
                      use_cache, bf16_exp):
    pass_idx = pl.program_id(1)          # 0: online softmax stats, 1: CE accum
    ci = pl.program_id(2)                # C-tile index (reduction axis, last)
    num_c = pl.num_programs(2)

    if use_cache:
        # Pass 0 stashes the native-dtype tile into the persistent row-stripe
        # cache; pass 1 reads from the cache (its logits block is pinned to
        # (bi, 0) by the index_map, so no second HBM stream happens).
        cache_ref = cache[0]
        c_start = pl.multiple_of(ci * block_c, block_c)

        @pl.when(pass_idx == 0)
        def _():
            cache_ref[:, pl.ds(c_start, block_c)] = logits_ref[...]

        raw = cache_ref[:, pl.ds(c_start, block_c)]
    else:
        raw = logits_ref[...]

    logits = raw.astype(jnp.float32)                     # (Bt, Ct) f32 in-kernel
    tgt = target_ref[...]                                 # (Bt, 1) int32
    bt, ct = logits.shape

    # Compare the raw lane iota against per-row shifted targets (no full-tile
    # i32 add / materialized global column index).
    lane = jax.lax.broadcasted_iota(jnp.int32, (bt, ct), 1)
    is_tgt = lane == (tgt - ci * block_c)                 # boolean one-hot slice

    needs_mask = (num_classes % block_c) != 0             # static Python bool
    if needs_mask:
        valid = lane < (num_classes - ci * block_c)

    # Original target logit for rows whose target column lives in this tile
    # (0 elsewhere; unused there since is_tgt is all-False for those rows).
    orig = jnp.sum(jnp.where(is_tgt, logits, 0.0), axis=1, keepdims=True)
    x = jnp.clip(orig, -1.0 + 1e-07, 1.0 - 1e-07)         # torch clamp_

    # marginal = cos(m1*acos(x) + m2) - m3 without an in-kernel acos:
    # theta = acos(x) in [0, pi] => cos(theta) = x, sin(theta) = sqrt(1 - x^2).
    sin_t = jnp.sqrt(jnp.maximum(1.0 - x * x, 0.0))
    cos_k = jnp.ones_like(x)
    sin_k = jnp.zeros_like(x)
    for _ in range(int(m1)):             # angle-addition recurrence to m1*theta
        cos_k, sin_k = cos_k * x - sin_k * sin_t, sin_k * x + cos_k * sin_t
    marginal = cos_k * math.cos(m2) - sin_k * math.sin(m2) - m3       # (Bt, 1)

    # Scaled logits with the target column replaced by the marginal logit.
    z = scale * jnp.where(is_tgt, marginal, logits)                   # (Bt, Ct)
    if needs_mask:
        z = jnp.where(valid, z, -jnp.inf)       # neutralize OOB / padded lanes

    @pl.when(jnp.logical_and(pass_idx == 0, ci == 0))
    def _():
        m_acc[...] = jnp.full_like(m_acc, -jnp.inf)
        l_acc[...] = jnp.zeros_like(l_acc)
        s_acc[...] = jnp.zeros_like(s_acc)
        pt_acc[...] = jnp.zeros_like(pt_acc)

    @pl.when(pass_idx == 0)
    def _():
        # Pass 0: online (flash-style) max / sum-of-exp over z.
        m_new = jnp.maximum(m_acc[...], jnp.max(z, axis=1, keepdims=True))
        alpha = jnp.exp(m_acc[...] - m_new)
        l_acc[...] = alpha * l_acc[...] + jnp.sum(
            jnp.exp(z - m_new), axis=1, keepdims=True)
        m_acc[...] = m_new

    @pl.when(pass_idx == 1)
    def _():
        # Pass 1: probas = softmax(z) recomputed from carried (m, l); torch's
        # F.cross_entropy re-softmaxes the probas, so accumulate sum(exp(p))
        # and p[target].  p in [0, 1] => no max-shift needed for the 2nd LSE.
        inv_l = pl.reciprocal(l_acc[...], approx=True)
        p = jnp.exp(z - m_acc[...]) * inv_l                # 0 on masked lanes
        if bf16_exp:
            # p is well-conditioned in [0, 1]; bf16 EUP runs ~2x the f32 rate
            # on v6e/v7x, cutting the dominant pass-1 exp chain.
            ep = jnp.exp(p.astype(jnp.bfloat16)).astype(jnp.float32)
        else:
            ep = jnp.exp(p)
        if needs_mask:
            ep = jnp.where(valid, ep, 0.0)                 # exclude pad lanes
        s_acc[...] += jnp.sum(ep, axis=1, keepdims=True)
        pt_acc[...] += jnp.sum(jnp.where(is_tgt, p, 0.0), axis=1, keepdims=True)

    @pl.when(jnp.logical_and(pass_idx == 1, ci == num_c - 1))
    def _():
        # Per-row NLL: logsumexp(p) - p[target]; batch mean happens outside.
        loss_ref[...] = jnp.log(s_acc[...]) - pt_acc[...]


def face_loss(logits, target, m1=1, m2=0.0, m3=0.0, scale=64.0,
              block_b=None, block_c=None, cache_stripe=None, bf16_exp=None):
    """Pallas implementation of FaceLoss.forward(logits, target)."""
    B, C = logits.shape
    if float(m1) != int(m1):
        raise NotImplementedError(
            "non-integer m1 requires an in-kernel arccos (not supported)")

    itemsize = jnp.dtype(logits.dtype).itemsize
    # Sublane granularity depends on dtype packing (f32: 8, bf16: 16, int8: 32).
    sub = 8 * max(1, 4 // itemsize)

    vmem_cap = _vmem_capacity_bytes()
    big_vmem = vmem_cap >= 100 * 1024 * 1024   # 128 MiB (v5e/v6e) vs 64 MiB (v7x)
    is_v5e = _is_v5e()

    if block_b is None:
        block_b = 256 if big_vmem else 128
    if block_c is None:
        block_c = 4096
    if bf16_exp is None:
        bf16_exp = not is_v5e                  # bf16 EUP only on v6e / v7x
    if cache_stripe is None:
        cache_stripe = is_v5e                  # halve HBM reads on lowest-BW gen

    bt = min(block_b, _round_up(B, sub))
    if B > sub:            # guarantee >=2 batch tiles -> megacore sharding (v7x)
        bt = min(bt, max(sub, _round_up((B + 1) // 2, sub)))
    ct = min(block_c, _round_up(C, 128))
    num_b = _cdiv(B, bt)
    num_c = _cdiv(C, ct)

    # Optional VMEM cache of the whole native-dtype row stripe so pass 1 does
    # not re-stream the logits from HBM (worth it on HBM-bound v5e).
    c_stripe = num_c * ct
    use_cache = (bool(cache_stripe) and num_c > 1
                 and bt * c_stripe * itemsize <= 40 * 1024 * 1024)

    if big_vmem:
        vmem_limit = (96 if use_cache else 80) * 1024 * 1024
    else:
        vmem_limit = 48 * 1024 * 1024
    vmem_limit = max(32 * 1024 * 1024,
                     min(vmem_limit, vmem_cap - 8 * 1024 * 1024))

    tgt = target.astype(jnp.int32).reshape(B, 1)

    if use_cache:
        # Pass 1 pins the logits block to (bi, 0): same block index across the
        # whole pass -> pipeline issues no further DMAs; data comes from cache.
        logits_spec = pl.BlockSpec((bt, ct), lambda bi, pi, ci: (bi, ci * (1 - pi)))
    else:
        logits_spec = pl.BlockSpec((bt, ct), lambda bi, pi, ci: (bi, ci))

    scratch = [pltpu.VMEM((bt, 1), jnp.float32)] * 4          # m, l, s, pt
    if use_cache:
        scratch.append(pltpu.VMEM((bt, c_stripe), logits.dtype))

    kernel = functools.partial(
        _face_loss_kernel,
        m1=int(m1), m2=float(m2), m3=float(m3), scale=float(scale),
        num_classes=C, block_c=ct,
        use_cache=use_cache, bf16_exp=bool(bf16_exp))

    per_row = pl.pallas_call(
        kernel,
        out_shape=jax.ShapeDtypeStruct((B, 1), jnp.float32),
        grid=(num_b, 2, num_c),
        in_specs=[
            logits_spec,                                        # logits tile
            pl.BlockSpec((bt, 1), lambda bi, pi, ci: (bi, 0)),  # targets
        ],
        out_specs=pl.BlockSpec((bt, 1), lambda bi, pi, ci: (bi, 0)),
        scratch_shapes=scratch,
        compiler_params=pltpu.CompilerParams(
            dimension_semantics=("parallel", "arbitrary", "arbitrary"),
            vmem_limit_bytes=int(vmem_limit),
        ),
    )(logits, tgt)
    # Output is exactly (B, 1): out-of-bounds rows of partial edge blocks are
    # never written back, so a plain mean over the real rows is safe.
    return jnp.mean(per_row)


def face_loss_ref(logits, target, m1=1, m2=0.0, m3=0.0, scale=64.0):
    """Plain-JAX reference mirroring the PyTorch forward exactly."""
    logits = logits.astype(jnp.float32)
    C = logits.shape[1]
    one_hot = jax.nn.one_hot(target, C, dtype=jnp.float32)
    orig = jnp.sum(logits * one_hot, axis=1)
    x = jnp.clip(orig, -1.0 + 1e-07, 1.0 - 1e-07)
    theta = jnp.arccos(x)
    marginal = jnp.cos(m1 * theta + m2) - m3
    z = scale * (one_hot * marginal[:, None] + (1.0 - one_hot) * logits)
    p = jax.nn.softmax(z, axis=1)
    logp = jax.nn.log_softmax(p, axis=1)    # F.cross_entropy re-softmaxes
    return -jnp.mean(jnp.sum(one_hot * logp, axis=1))


if __name__ == "__main__":
    key = jax.random.PRNGKey(0)
    k1, k2, k3, k4, k5, k6 = jax.random.split(key, 6)

    # 1) Toy case matching the MNIST module (data.c == 10 classes).
    B, C = 8, 10
    logits = jax.random.uniform(k1, (B, C), jnp.float32, minval=-1.0, maxval=1.0)
    target = jax.random.randint(k2, (B,), 0, C, dtype=jnp.int32)
    loss = face_loss(logits, target)
    jax.block_until_ready(loss)
    ref = face_loss_ref(logits, target)
    assert jnp.isfinite(loss), "loss is not finite"
    assert abs(float(loss) - float(ref)) < 5e-3, (float(loss), float(ref))

    # 2) Tiled path: bf16 logits, multiple C tiles with a partial edge tile,
    #    partial batch tile, non-default margins.
    B2, C2 = 20, 3000
    logits2 = jax.random.uniform(k3, (B2, C2), jnp.float32,
                                 minval=-1.0, maxval=1.0).astype(jnp.bfloat16)
    target2 = jax.random.randint(k4, (B2,), 0, C2, dtype=jnp.int32)
    loss2 = face_loss(logits2, target2, m1=2, m2=0.3, m3=0.1, scale=30.0,
                      block_c=1024)
    jax.block_until_ready(loss2)
    ref2 = face_loss_ref(logits2, target2, m1=2, m2=0.3, m3=0.1, scale=30.0)
    assert jnp.isfinite(loss2), "tiled loss is not finite"
    assert abs(float(loss2) - float(ref2)) < 5e-3, (float(loss2), float(ref2))

    # 3) Row-stripe VMEM cache path (the v5e optimization), forced on so it is
    #    exercised regardless of which chip this runs on.
    B3, C3 = 16, 3000
    logits3 = jax.random.uniform(k5, (B3, C3), jnp.float32,
                                 minval=-1.0, maxval=1.0)
    target3 = jax.random.randint(k6, (B3,), 0, C3, dtype=jnp.int32)
    loss3 = face_loss(logits3, target3, scale=16.0, block_c=512,
                      cache_stripe=True, bf16_exp=False)
    jax.block_until_ready(loss3)
    ref3 = face_loss_ref(logits3, target3, scale=16.0)
    assert jnp.isfinite(loss3), "cached loss is not finite"
    assert abs(float(loss3) - float(ref3)) < 5e-3, (float(loss3), float(ref3))

    print("KERNEL_OK")
</pallas_src>

<mosaic_0001>
module attributes {stable_mosaic.version = 11 : i64} {
  func.func @_face_loss_kernel(%arg0: i32, %arg1: i32, %arg2: i32, %arg3: memref<8x128xf32, #tpu.memory_space<vmem>>, %arg4: memref<8x1xi32, #tpu.memory_space<vmem>>, %arg5: memref<8x1xf32, #tpu.memory_space<vmem>>, %arg6: memref<8x1xf32, #tpu.memory_space<vmem>>, %arg7: memref<8x1xf32, #tpu.memory_space<vmem>>, %arg8: memref<8x1xf32, #tpu.memory_space<vmem>>, %arg9: memref<8x1xf32, #tpu.memory_space<vmem>>) attributes {dimension_semantics = [#tpu.dimension_semantics<parallel>, #tpu.dimension_semantics<arbitrary>, #tpu.dimension_semantics<arbitrary>], iteration_bounds = array<i64: 1, 2, 1>, scalar_prefetch = 0 : i64, scratch_operands = 4 : i64, tpu.core_type = #tpu.core_type<tc>, window_params = [{transform_indices = @transform_0, window_bounds = array<i64: 8, 128>}, {transform_indices = @transform_1, window_bounds = array<i64: 8, 1>}, {transform_indices = @transform_2, window_bounds = array<i64: 8, 1>}]} {
    %c0 = arith.constant 0 : index
    %c0_0 = arith.constant 0 : index
    %0 = vector.load %arg3[%c0, %c0_0] : memref<8x128xf32, #tpu.memory_space<vmem>>, vector<8x128xf32>
    %c0_1 = arith.constant 0 : index
    %c0_2 = arith.constant 0 : index
    %1 = vector.load %arg4[%c0_1, %c0_2] : memref<8x1xi32, #tpu.memory_space<vmem>>, vector<8x1xi32>
    %2 = tpu.iota {dimensions = array<i32: 1>} : vector<8x128xi32>
    %c128_i32 = arith.constant 128 : i32
    %3 = arith.muli %arg2, %c128_i32 : i32
    %4 = vector.broadcast %3 : i32 to vector<8x1xi32>
    %5 = arith.subi %1, %4 : vector<8x1xi32>
    %6 = vector.broadcast %5 : vector<8x1xi32> to vector<8x128xi32>
    %7 = arith.cmpi eq, %2, %6 : vector<8x128xi32>
    %c128_i32_3 = arith.constant 128 : i32
    %8 = arith.muli %arg2, %c128_i32_3 : i32
    %c10_i32 = arith.constant 10 : i32
    %9 = arith.subi %c10_i32, %8 : i32
    %10 = vector.broadcast %9 : i32 to vector<8x128xi32>
    %11 = arith.cmpi slt, %2, %10 : vector<8x128xi32>
    %cst = arith.constant 0.000000e+00 : f32
    %12 = vector.broadcast %cst : f32 to vector<8x128xf32>
    %13 = arith.select %7, %0, %12 : vector<8x128xi1>, vector<8x128xf32>
    %cst_4 = arith.constant dense<0.000000e+00> : vector<8xf32>
    %14 = vector.multi_reduction <add>, %13, %cst_4 [1] : vector<8x128xf32> to vector<8xf32>
    %15 = vector.shape_cast %14 : vector<8xf32> to vector<8x1xf32>
    %cst_5 = arith.constant -0.99999988 : f32
    %cst_6 = arith.constant 0.99999988 : f32
    %16 = vector.broadcast %cst_5 : f32 to vector<8x1xf32>
    %17 = arith.maximumf %16, %15 : vector<8x1xf32>
    %18 = vector.broadcast %cst_6 : f32 to vector<8x1xf32>
    %19 = arith.minimumf %18, %17 : vector<8x1xf32>
    %20 = arith.mulf %19, %19 : vector<8x1xf32>
    %cst_7 = arith.constant 1.000000e+00 : f32
    %21 = vector.broadcast %cst_7 : f32 to vector<8x1xf32>
    %22 = arith.subf %21, %20 : vector<8x1xf32>
    %cst_8 = arith.constant 0.000000e+00 : f32
    %23 = vector.broadcast %cst_8 : f32 to vector<8x1xf32>
    %24 = arith.maximumf %22, %23 : vector<8x1xf32>
    %25 = math.sqrt %24 : vector<8x1xf32>
    %cst_9 = arith.constant 1.000000e+00 : f32
    %26 = vector.broadcast %cst_9 : f32 to vector<8x1xf32>
    %cst_10 = arith.constant 0.000000e+00 : f32
    %27 = vector.broadcast %cst_10 : f32 to vector<8x1xf32>
    %28 = arith.mulf %26, %19 : vector<8x1xf32>
    %29 = arith.mulf %27, %25 : vector<8x1xf32>
    %30 = arith.subf %28, %29 : vector<8x1xf32>
    %31 = arith.mulf %27, %19 : vector<8x1xf32>
    %32 = arith.mulf %26, %25 : vector<8x1xf32>
    %33 = arith.addf %31, %32 : vector<8x1xf32>
    %cst_11 = arith.constant 1.000000e+00 : f32
    %34 = vector.broadcast %cst_11 : f32 to vector<8x1xf32>
    %35 = arith.mulf %30, %34 : vector<8x1xf32>
    %cst_12 = arith.constant 0.000000e+00 : f32
    %36 = vector.broadcast %cst_12 : f32 to vector<8x1xf32>
    %37 = arith.mulf %33, %36 : vector<8x1xf32>
    %38 = arith.subf %35, %37 : vector<8x1xf32>
    %cst_13 = arith.constant 0.000000e+00 : f32
    %39 = vector.broadcast %cst_13 : f32 to vector<8x1xf32>
    %40 = arith.subf %38, %39 : vector<8x1xf32>
    %41 = vector.shape_cast %40 : vector<8x1xf32> to vector<8x1xf32>
    %42 = vector.broadcast %41 : vector<8x1xf32> to vector<8x128xf32>
    %43 = arith.select %7, %42, %0 : vector<8x128xi1>, vector<8x128xf32>
    %cst_14 = arith.constant 6.400000e+01 : f32
    %44 = vector.broadcast %cst_14 : f32 to vector<8x128xf32>
    %45 = arith.mulf %44, %43 : vector<8x128xf32>
    %cst_15 = arith.constant 0xFF800000 : f32
    %46 = vector.broadcast %cst_15 : f32 to vector<8x128xf32>
    %47 = arith.select %11, %45, %46 : vector<8x128xi1>, vector<8x128xf32>
    %c0_i32 = arith.constant 0 : i32
    %48 = arith.cmpi eq, %arg1, %c0_i32 : i32
    %c0_i32_16 = arith.constant 0 : i32
    %49 = arith.cmpi eq, %arg2, %c0_i32_16 : i32
    %50 = arith.andi %48, %49 : i1
    %51 = arith.extui %50 : i1 to i32
    %c0_i32_17 = arith.constant 0 : i32
    %52 = arith.cmpi ne, %51, %c0_i32_17 : i32
    scf.if %52 {
      %cst_24 = arith.constant 0xFF800000 : f32
      %64 = vector.broadcast %cst_24 : f32 to vector<8x1xf32>
      %c0_25 = arith.constant 0 : index
      %c0_26 = arith.constant 0 : index
      %65 = vector.load %arg6[%c0_25, %c0_26] : memref<8x1xf32, #tpu.memory_space<vmem>>, vector<8x1xf32>
      tpu.vector_store %arg6[%c0_25, %c0_26], %64 {strides = array<i32>} : memref<8x1xf32, #tpu.memory_space<vmem>>, vector<8x1xf32>,
      %cst_27 = arith.constant 0.000000e+00 : f32
      %66 = vector.broadcast %cst_27 : f32 to vector<8x1xf32>
      %c0_28 = arith.constant 0 : index
      %c0_29 = arith.constant 0 : index
      %67 = vector.load %arg7[%c0_28, %c0_29] : memref<8x1xf32, #tpu.memory_space<vmem>>, vector<8x1xf32>
      tpu.vector_store %arg7[%c0_28, %c0_29], %66 {strides = array<i32>} : memref<8x1xf32, #tpu.memory_space<vmem>>, vector<8x1xf32>,
      %cst_30 = arith.constant 0.000000e+00 : f32
      %68 = vector.broadcast %cst_30 : f32 to vector<8x1xf32>
      %c0_31 = arith.constant 0 : index
      %c0_32 = arith.constant 0 : index
      %69 = vector.load %arg8[%c0_31, %c0_32] : memref<8x1xf32, #tpu.memory_space<vmem>>, vector<8x1xf32>
      tpu.vector_store %arg8[%c0_31, %c0_32], %68 {strides = array<i32>} : memref<8x1xf32, #tpu.memory_space<vmem>>, vector<8x1xf32>,
      %cst_33 = arith.constant 0.000000e+00 : f32
      %70 = vector.broadcast %cst_33 : f32 to vector<8x1xf32>
      %c0_34 = arith.constant 0 : index
      %c0_35 = arith.constant 0 : index
      %71 = vector.load %arg9[%c0_34, %c0_35] : memref<8x1xf32, #tpu.memory_space<vmem>>, vector<8x1xf32>
      tpu.vector_store %arg9[%c0_34, %c0_35], %70 {strides = array<i32>} : memref<8x1xf32, #tpu.memory_space<vmem>>, vector<8x1xf32>,
    } else {
    }
    %c0_i32_18 = arith.constant 0 : i32
    %53 = arith.cmpi eq, %arg1, %c0_i32_18 : i32
    %54 = arith.extui %53 : i1 to i32
    %c0_i32_19 = arith.constant 0 : i32
    %55 = arith.cmpi ne, %54, %c0_i32_19 : i32
    scf.if %55 {
      %c0_24 = arith.constant 0 : index
      %c0_25 = arith.constant 0 : index
      %64 = vector.load %arg6[%c0_24, %c0_25] : memref<8x1xf32, #tpu.memory_space<vmem>>, vector<8x1xf32>
      %cst_26 = arith.constant dense<0xFF800000> : vector<8xf32>
      %65 = vector.multi_reduction <maximumf>, %47, %cst_26 [1] : vector<8x128xf32> to vector<8xf32>
      %66 = vector.shape_cast %65 : vector<8xf32> to vector<8x1xf32>
      %67 = arith.maximumf %64, %66 : vector<8x1xf32>
      %c0_27 = arith.constant 0 : index
      %c0_28 = arith.constant 0 : index
      %68 = vector.load %arg6[%c0_27, %c0_28] : memref<8x1xf32, #tpu.memory_space<vmem>>, vector<8x1xf32>
      %69 = arith.subf %68, %67 : vector<8x1xf32>
      %70 = math.exp %69 : vector<8x1xf32>
      %c0_29 = arith.constant 0 : index
      %c0_30 = arith.constant 0 : index
      %71 = vector.load %arg7[%c0_29, %c0_30] : memref<8x1xf32, #tpu.memory_space<vmem>>, vector<8x1xf32>
      %72 = arith.mulf %70, %71 : vector<8x1xf32>
      %73 = vector.broadcast %67 : vector<8x1xf32> to vector<8x128xf32>
      %74 = arith.subf %47, %73 : vector<8x128xf32>
      %75 = math.exp %74 : vector<8x128xf32>
      %cst_31 = arith.constant dense<0.000000e+00> : vector<8xf32>
      %76 = vector.multi_reduction <add>, %75, %cst_31 [1] : vector<8x128xf32> to vector<8xf32>
      %77 = vector.shape_cast %76 : vector<8xf32> to vector<8x1xf32>
      %78 = arith.addf %72, %77 : vector<8x1xf32>
      %c0_32 = arith.constant 0 : index
      %c0_33 = arith.constant 0 : index
      %79 = vector.load %arg7[%c0_32, %c0_33] : memref<8x1xf32, #tpu.memory_space<vmem>>, vector<8x1xf32>
      tpu.vector_store %arg7[%c0_32, %c0_33], %78 {strides = array<i32>} : memref<8x1xf32, #tpu.memory_space<vmem>>, vector<8x1xf32>,
      %c0_34 = arith.constant 0 : index
      %c0_35 = arith.constant 0 : index
      %80 = vector.load %arg6[%c0_34, %c0_35] : memref<8x1xf32, #tpu.memory_space<vmem>>, vector<8x1xf32>
      tpu.vector_store %arg6[%c0_34, %c0_35], %67 {strides = array<i32>} : memref<8x1xf32, #tpu.memory_space<vmem>>, vector<8x1xf32>,
    } else {
    }
    %c1_i32 = arith.constant 1 : i32
    %56 = arith.cmpi eq, %arg1, %c1_i32 : i32
    %57 = arith.extui %56 : i1 to i32
    %c0_i32_20 = arith.constant 0 : i32
    %58 = arith.cmpi ne, %57, %c0_i32_20 : i32
    scf.if %58 {
      %c0_24 = arith.constant 0 : index
      %c0_25 = arith.constant 0 : index
      %64 = vector.load %arg7[%c0_24, %c0_25] : memref<8x1xf32, #tpu.memory_space<vmem>>, vector<8x1xf32>
      %65 = tpu.reciprocal %64 {approx = true} : vector<8x1xf32> -> vector<8x1xf32>
      %c0_26 = arith.constant 0 : index
      %c0_27 = arith.constant 0 : index
      %66 = vector.load %arg6[%c0_26, %c0_27] : memref<8x1xf32, #tpu.memory_space<vmem>>, vector<8x1xf32>
      %67 = vector.broadcast %66 : vector<8x1xf32> to vector<8x128xf32>
      %68 = arith.subf %47, %67 : vector<8x128xf32>
      %69 = math.exp %68 : vector<8x128xf32>
      %70 = vector.broadcast %65 : vector<8x1xf32> to vector<8x128xf32>
      %71 = arith.mulf %69, %70 : vector<8x128xf32>
      %72 = arith.truncf %71 : vector<8x128xf32> to vector<8x128xbf16>
      %73 = math.exp %72 : vector<8x128xbf16>
      %74 = arith.extf %73 : vector<8x128xbf16> to vector<8x128xf32>
      %cst_28 = arith.constant 0.000000e+00 : f32
      %75 = vector.broadcast %cst_28 : f32 to vector<8x128xf32>
      %76 = arith.select %11, %74, %75 : vector<8x128xi1>, vector<8x128xf32>
      %c0_29 = arith.constant 0 : index
      %c0_30 = arith.constant 0 : index
      %77 = vector.load %arg8[%c0_29, %c0_30] : memref<8x1xf32, #tpu.memory_space<vmem>>, vector<8x1xf32>
      %cst_31 = arith.constant dense<0.000000e+00> : vector<8xf32>
      %78 = vector.multi_reduction <add>, %76, %cst_31 [1] : vector<8x128xf32> to vector<8xf32>
      %79 = vector.shape_cast %78 : vector<8xf32> to vector<8x1xf32>
      %80 = arith.addf %77, %79 : vector<8x1xf32>
      %c0_32 = arith.constant 0 : index
      %c0_33 = arith.constant 0 : index
      %81 = vector.load %arg8[%c0_32, %c0_33] : memref<8x1xf32, #tpu.memory_space<vmem>>, vector<8x1xf32>
      tpu.vector_store %arg8[%c0_32, %c0_33], %80 {strides = array<i32>} : memref<8x1xf32, #tpu.memory_space<vmem>>, vector<8x1xf32>,
      %c0_34 = arith.constant 0 : index
      %c0_35 = arith.constant 0 : index
      %82 = vector.load %arg9[%c0_34, %c0_35] : memref<8x1xf32, #tpu.memory_space<vmem>>, vector<8x1xf32>
      %cst_36 = arith.constant 0.000000e+00 : f32
      %83 = vector.broadcast %cst_36 : f32 to vector<8x128xf32>
      %84 = arith.select %7, %71, %83 : vector<8x128xi1>, vector<8x128xf32>
      %cst_37 = arith.constant dense<0.000000e+00> : vector<8xf32>
      %85 = vector.multi_reduction <add>, %84, %cst_37 [1] : vector<8x128xf32> to vector<8xf32>
      %86 = vector.shape_cast %85 : vector<8xf32> to vector<8x1xf32>
      %87 = arith.addf %82, %86 : vector<8x1xf32>
      %c0_38 = arith.constant 0 : index
      %c0_39 = arith.constant 0 : index
      %88 = vector.load %arg9[%c0_38, %c0_39] : memref<8x1xf32, #tpu.memory_space<vmem>>, vector<8x1xf32>
      tpu.vector_store %arg9[%c0_38, %c0_39], %87 {strides = array<i32>} : memref<8x1xf32, #tpu.memory_space<vmem>>, vector<8x1xf32>,
    } else {
    }
    %c1_i32_21 = arith.constant 1 : i32
    %59 = arith.cmpi eq, %arg1, %c1_i32_21 : i32
    %c0_i32_22 = arith.constant 0 : i32
    %60 = arith.cmpi eq, %arg2, %c0_i32_22 : i32
    %61 = arith.andi %59, %60 : i1
    %62 = arith.extui %61 : i1 to i32
    %c0_i32_23 = arith.constant 0 : i32
    %63 = arith.cmpi ne, %62, %c0_i32_23 : i32
    scf.if %63 {
      %c0_24 = arith.constant 0 : index
      %c0_25 = arith.constant 0 : index
      %64 = vector.load %arg8[%c0_24, %c0_25] : memref<8x1xf32, #tpu.memory_space<vmem>>, vector<8x1xf32>
      %65 = math.log %64 : vector<8x1xf32>
      %c0_26 = arith.constant 0 : index
      %c0_27 = arith.constant 0 : index
      %66 = vector.load %arg9[%c0_26, %c0_27] : memref<8x1xf32, #tpu.memory_space<vmem>>, vector<8x1xf32>
      %67 = arith.subf %65, %66 : vector<8x1xf32>
      %c0_28 = arith.constant 0 : index
      %c0_29 = arith.constant 0 : index
      %68 = vector.load %arg5[%c0_28, %c0_29] : memref<8x1xf32, #tpu.memory_space<vmem>>, vector<8x1xf32>
      tpu.vector_store %arg5[%c0_28, %c0_29], %67 {strides = array<i32>} : memref<8x1xf32, #tpu.memory_space<vmem>>, vector<8x1xf32>,
    } else {
    }
    return
  }
  func.func @transform_0(%arg0: i32, %arg1: i32, %arg2: i32) -> (i32, i32) {
    %c0_i32 = arith.constant 0 : i32
    return %arg0, %arg2 : i32, i32
  }
  func.func @transform_1(%arg0: i32, %arg1: i32, %arg2: i32) -> (i32, i32) {
    %c0_i32 = arith.constant 0 : i32
    %c0_i32_0 = arith.constant 0 : i32
    return %arg0, %c0_i32 : i32, i32
  }
  func.func @transform_2(%arg0: i32, %arg1: i32, %arg2: i32) -> (i32, i32) {
    %c0_i32 = arith.constant 0 : i32
    %c0_i32_0 = arith.constant 0 : i32
    return %arg0, %c0_i32 : i32, i32
  }
}

</mosaic_0001>

<llo_original>
// kernel: tpu_custom_call.1
$region0: #{tpu_custom_call.1}
  #allocation0 [shape = 'u32[]', space=smem, size = 0x4, offset = 0x4, fixed_abs, tag = 'smem constant byte address 0x4 - core index']
  #allocation1 [shape = 'u32[144,128]{1,0:T(1,128)}', space=vmem, size = 0x12000, scoped, tag = 'internal scratch']
  #allocation2 [shape = 'f32[8,1]{1,0:T(8,128)}', space=vmem, size = 0x1000, scoped, tag = 'scratch operand']
  #allocation3 [shape = 'f32[8,1]{1,0:T(8,128)}', space=vmem, size = 0x1000, scoped, tag = 'scratch operand']
  #allocation4 [shape = 'f32[8,1]{1,0:T(8,128)}', space=vmem, size = 0x1000, scoped, tag = 'scratch operand']
  #allocation5 [shape = 'f32[8,1]{1,0:T(8,128)}', space=vmem, size = 0x1000, scoped, tag = 'scratch operand']
  %s0 = inlined_call_operand.vmem [shape: f32[8,10], index: 0, kind: input, shape index: {}]
  %s1 = inlined_call_operand.vmem [shape: s32[8,1], index: 1, kind: input, shape index: {}]
  %s2 = inlined_call_operand.vmem [shape: f32[8,1], index: 2, kind: output, shape index: {}]
  %s3 = sld [smem:[#allocation0]]
  $region57: #{tpu_custom_call.1} parent=0
    _
  %s5 = ssub.s32 1, %s3
  %s6 = scalar_select 0, %s5, %s3
  loop: start=0, step=1, limit=4
  $region2: #{tpu_custom_call.1} parent=0 // loop_pre_header
    _
  $region3: #{tpu_custom_call.1} parent=0 // loop_header
    %s8 = sphi 0, %s12
    %p9 = scmp.ge.s32.totalorder %s8, 4
    %s15 = sphi 0, %s34
    %s16 = sphi 0, %s30
    %s17 = sphi 0, %s26
    %s18 = sphi 0, %s15
    %s19 = sphi 0, %s16
    %s20 = sphi 0, %s17
    %s21 = sphi 0, %s18
    %s22 = sphi 0, %s19
    %s23 = sphi 0, %s20
    %s39 = sphi 0, %s41
    %s42 = sphi 0, %s39
    %s43 = sphi 0, %s42
    %s59 = sphi 0, %s43
    %s65 = sphi 0, %s67
    %s68 = sphi 0, %s65
    %s69 = sphi 0, %s68
    %s85 = sphi 0, %s69
    %s91 = sphi 0, %s93
    %s94 = sphi 0, %s91
    %s95 = sphi 0, %s94
    %s111 = sphi 0, %s95
  $region4: #{tpu_custom_call.1} parent=0 // loop_header_branch
    %11 = sbr.rel (%p9) target = $region8
  $region5: #{tpu_custom_call.1} parent=0 // loop_body
    %s13 = ssub.s32 %s8, 1
    %s14 = ssub.s32 %s8, 2
    %s24 = sadd.s32 1, %s17
    %p25 = scmp.ge.s32.totalorder %s24, 1
    %s26 = scalar_select %p25, 0, %s24
    %s27 = sadd.s32 1, %s16
    %s28 = scalar_select %p25, %s27, %s16
    %p29 = scmp.ge.s32.totalorder %s28, 2
    %s30 = scalar_select %p29, 0, %s28
    %s31 = sadd.s32 1, %s15
    %s32 = scalar_select %p29, %s31, %s15
    %p33 = scmp.ge.s32.totalorder %s32, 1
    %s34 = scalar_select %p33, 0, %s32
    %s35 = ssub.s32 %s15, %s34
    %s36 = ssub.s32 %s17, %s26
    %s37 = sor.u32 %s35, %s36
    %p38 = scmp.eq.s32.totalorder %s37, 0
    %s40 = sadd.s32 %s39, 1
    %s41 = scalar_select %p38, %s39, %s40
    %p44 = pneg %p38
    %p45 = scmp.eq.s32.totalorder %s8, 1
    %p46 = por %p44, %p45
    %p47 = scmp.ne.s32.totalorder %s39, %s42
    %p48 = scmp.eq.s32.totalorder %s8, 0
    %p49 = por %p47, %p48
    %p50 = scmp.ne.s32.totalorder %s39, %s42
    %p51 = scmp.eq.s32.totalorder %s13, 1
    %p52 = por %p50, %p51
    %p53 = scmp.ne.s32.totalorder %s42, %s43
    %p54 = scmp.eq.s32.totalorder %s13, 0
    %p55 = por %p53, %p54
    %p56 = scmp.ne.s32.totalorder %s42, %s43
    %p57 = scmp.eq.s32.totalorder %s14, 1
    %p58 = por %p56, %p57
    %p60 = scmp.ne.s32.totalorder %s43, %s59
    %p61 = scmp.eq.s32.totalorder %s14, 0
    %p62 = por %p60, %p61
    %s63 = ssub.s32 %s15, %s34
    %p64 = scmp.eq.s32.totalorder %s63, 0
    %s66 = sadd.s32 %s65, 1
    %s67 = scalar_select %p64, %s65, %s66
    %p70 = pneg %p64
    %p71 = scmp.eq.s32.totalorder %s8, 1
    %p72 = por %p70, %p71
    %p73 = scmp.ne.s32.totalorder %s65, %s68
    %p74 = scmp.eq.s32.totalorder %s8, 0
    %p75 = por %p73, %p74
    %p76 = scmp.ne.s32.totalorder %s65, %s68
    %p77 = scmp.eq.s32.totalorder %s13, 1
    %p78 = por %p76, %p77
    %p79 = scmp.ne.s32.totalorder %s68, %s69
    %p80 = scmp.eq.s32.totalorder %s13, 0
    %p81 = por %p79, %p80
    %p82 = scmp.ne.s32.totalorder %s68, %s69
    %p83 = scmp.eq.s32.totalorder %s14, 1
    %p84 = por %p82, %p83
    %p86 = scmp.ne.s32.totalorder %s69, %s85
    %p87 = scmp.eq.s32.totalorder %s14, 0
    %p88 = por %p86, %p87
    %s89 = ssub.s32 %s15, %s34
    %p90 = scmp.eq.s32.totalorder %s89, 0
    %s92 = sadd.s32 %s91, 1
    %s93 = scalar_select %p90, %s91, %s92
    %p96 = pneg %p90
    %p97 = scmp.eq.s32.totalorder %s8, 1
    %p98 = por %p96, %p97
    %p99 = scmp.ne.s32.totalorder %s91, %s94
    %p100 = scmp.eq.s32.totalorder %s8, 0
    %p101 = por %p99, %p100
    %p102 = scmp.ne.s32.totalorder %s91, %s94
    %p103 = scmp.eq.s32.totalorder %s13, 1
    %p104 = por %p102, %p103
    %p105 = scmp.ne.s32.totalorder %s94, %s95
    %p106 = scmp.eq.s32.totalorder %s13, 0
    %p107 = por %p105, %p106
    %p108 = scmp.ne.s32.totalorder %s94, %s95
    %p109 = scmp.eq.s32.totalorder %s14, 1
    %p110 = por %p108, %p109
    %p112 = scmp.ne.s32.totalorder %s95, %s111
    %p113 = scmp.eq.s32.totalorder %s14, 0
    %p114 = por %p112, %p113
    %p115 = scmp.le.s32.totalorder 1, %s8
    %p116 = scmp.lt.s32.totalorder %s8, 3
    %p117 = pnand %p115, %p116
    %p118 = pneg %p117
    // Predicated region
    $region9: #{tpu_custom_call.1} parent=5 // pred_check
      _
    $region10: #{tpu_custom_call.1} parent=5 // pred_check_branch
      %120 = sbr.rel (%p117) target = $region12
    $region11: #{tpu_custom_call.1} parent=5 // pred_region
      %s121 = ssub.s32 %s8, 1
      // Predicated region
      $region13: #{tpu_custom_call.1} parent=11 // pred_check
        %p122 = pneg %p55
      $region14: #{tpu_custom_call.1} parent=11 // pred_check_branch
        %124 = sbr.rel (%p122) target = $region16
      $region15: #{tpu_custom_call.1} parent=11 // pred_region
        %p125 = scmp.lt.s32.totalorder %s18, 0
        %s126 = scalar_select %p125, %s18, 0
        %p127 = scmp.lt.s32.totalorder %s20, 0
        %s128 = scalar_select %p127, %s20, 0
        %s129 = sadd.s32 %s128, %s126
        %s130 = smul.addr %s129, 8
        %s131 = scalar_lea.vmem %s0, %s130
      $region16: #{tpu_custom_call.1} parent=11 // pred_fallthru
        _
      // Predicated region
      $region17: #{tpu_custom_call.1} parent=11 // pred_check
        %p132 = pneg %p81
      $region18: #{tpu_custom_call.1} parent=11 // pred_check_branch
        %134 = sbr.rel (%p132) target = $region20
      $region19: #{tpu_custom_call.1} parent=11 // pred_region
        %p135 = scmp.lt.s32.totalorder %s18, 0
        %s136 = scalar_select %p135, %s18, 0
        %s137 = smul.addr %s136, 8
        %s138 = scalar_lea.vmem %s1, %s137
      $region20: #{tpu_custom_call.1} parent=11 // pred_fallthru
        _
    $region12: #{tpu_custom_call.1} parent=5 // pred_fallthru
      _
    %p139 = scmp.lt.s32.totalorder %s8, 2
    // Predicated region
    $region21: #{tpu_custom_call.1} parent=5 // pred_check
      %p140 = pneg %p139
    $region22: #{tpu_custom_call.1} parent=5 // pred_check_branch
      %142 = sbr.rel (%p140) target = $region24
    $region23: #{tpu_custom_call.1} parent=5 // pred_region
      _
    $region24: #{tpu_custom_call.1} parent=5 // pred_fallthru
      _
    %p143 = scmp.le.s32.totalorder 1, %s8
    %p144 = scmp.lt.s32.totalorder %s8, 3
    %p145 = pnand %p143, %p144
    %p146 = pneg %p145
    // Predicated region
    $region25: #{tpu_custom_call.1} parent=5 // pred_check
      _
    $region26: #{tpu_custom_call.1} parent=5 // pred_check_branch
      %148 = sbr.rel (%p145) target = $region28
    $region27: #{tpu_custom_call.1} parent=5 // pred_region
      %s149 = ssub.s32 %s8, 1
      %p150 = scmp.lt.s32.totalorder %s18, 0
      %s151 = scalar_select %p150, %s18, 0
      %p152 = scmp.lt.s32.totalorder %s20, 0
      %s153 = scalar_select %p152, %s20, 0
      %s154 = sadd.s32 %s153, %s151
      %s155 = smul.addr %s154, 8
      %s156 = scalar_lea.vmem %s0, %s155
      %p157 = pneg %p55
      %p158 = pneg %p52
      %p159 = scmp.lt.s32.totalorder %s18, 0
      %s160 = scalar_select %p159, %s18, 0
      %s161 = smul.addr %s160, 8
      %s162 = scalar_lea.vmem %s1, %s161
      %p163 = pneg %p81
      %p164 = pneg %p78
      %p165 = pneg %p107
      %p166 = pneg %p104
      %p167 = scmp.lt.s32.totalorder %s18, 0
      %s168 = scalar_select %p167, %s18, 0
      %s169 = smul.addr %s168, 8
      %s170 = scalar_lea.vmem %s2, %s169
      %p171 = scmp.lt.s32.totalorder %s18, 0
      %s172 = scalar_select %p171, %s18, 0
      %p173 = scmp.lt.s32.totalorder %s20, 0
      %s174 = scalar_select %p173, %s20, 0
      %s175 = sadd.s32 %s174, %s172
      %s176 = smul.addr %s175, 8
      %s177 = scalar_lea.vmem %s0, %s176
      %p178 = scmp.lt.s32.totalorder %s18, 0
      %s179 = scalar_select %p178, %s18, 0
      %s180 = smul.addr %s179, 8
      %s181 = scalar_lea.vmem %s1, %s180
      %p182 = scmp.lt.s32.totalorder %s18, 0
      %s183 = scalar_select %p182, %s18, 0
      %s184 = smul.addr %s183, 8
      %s185 = scalar_lea.vmem %s2, %s184
      %v186 = vld [vmem:[%s177] sm:$0xff]
      %v187 = vld [vmem:[%s181] sm:$0xff]
      %v188 = vlaneseq
      %v189 = vand.u32 %v188, 127
      %s190 = smul.u32 %s20, 128
      %v191 = vstv %s190
      %v192 = vsub.s32 %v187, %v191
      %193 = vset.pattern.permute.xlu0 0
      %194 = vperm.xlu0 %193, %v192
      %v195 = vpop.permute.xlu0 %194
      %vm196 = vcmp.eq.s32.totalorder %v189, %v195
      %s197 = ssub.s32 10, %s190
      %v198 = vstv %s197
      %vm199 = vcmp.lt.s32.totalorder %v189, %v198
      %v200 = vsel %vm196, %v186, 0.0
      %201 = vadd.xlane.f32.xlu0 %v200
      %v202 = vpop.xlane.xlu0 %201
      %v203 = vmax.f32 %v202, -0.9999999
      %v204 = vmin.f32 %v203, 0.9999999
      %v205 = vmul.f32 %v204, %v204
      %v206 = vsub.f32 1.0, %v205
      %v207 = vmax.f32 %v206, 0.0
      %v208 = vrsqrt.pop %v207
      %v209 = vmul.f32 %v207, %v208
      %vm210 = vcmp.eq.f32.partialorder %v207, inf
      %v211 = vsel %vm210, %v207, %v209
      %vm212 = vcmp.eq.f32.partialorder %v207, 0.0
      %v213 = vand.u32 %v207, 2147483648
      %v214 = vsel %vm212, %v213, %v211
      %v215 = vmul.f32 %v214, 0.0
      %v216 = vsub.f32 %v204, %v215
      %v217 = vmul.f32 %v204, 0.0
      %v218 = vadd.f32 %v217, %v214
      %v219 = vmul.f32 %v218, 0.0
      %v220 = vsub.f32 %v216, %v219
      %v221 = vsel %vm196, %v220, %v186
      %v222 = vmul.f32 %v221, 64.0
      %v223 = vsel %vm199, %v222, -inf
      %p224 = scmp.eq.s32.totalorder %s19, 0
      %p225 = scmp.eq.s32.totalorder %s20, 0
      %p226 = pnand %p224, %p225
      %p227 = pneg %p226
      // Predicated region
      $region29: #{tpu_custom_call.1} parent=27 // pred_check
        _
      $region30: #{tpu_custom_call.1} parent=27 // pred_check_branch
        %229 = sbr.rel (%p226) target = $region32
      $region31: #{tpu_custom_call.1} parent=27 // pred_region
        %vm230 = vcmask 7168
        %231 = vst.msk [vmem:[#allocation2] sm:$0xff] %vm230, -inf
        %232 = vst.msk [vmem:[#allocation3] sm:$0xff] %vm230, 0.0
        %233 = vst.msk [vmem:[#allocation4] sm:$0xff] %vm230, 0.0
        %234 = vst.msk [vmem:[#allocation5] sm:$0xff] %vm230, 0.0
      $region32: #{tpu_custom_call.1} parent=27 // pred_fallthru
        _
      // Predicated region
      $region33: #{tpu_custom_call.1} parent=27 // pred_check
        %p235 = pneg %p224
      $region34: #{tpu_custom_call.1} parent=27 // pred_check_branch
        %237 = sbr.rel (%p235) target = $region36
      $region35: #{tpu_custom_call.1} parent=27 // pred_region
        %v238 = vld [vmem:[#allocation2] sm:$0xff]
        %239 = vmax.xlane.f32.xlu0 %v223
        %v240 = vpop.xlane.xlu0 %239
        %v241 = vmax.f32 %v238, %v240
        %v242 = vsub.f32 %v238, %v241
        %v243 = vmul.f32 %v242, 1.442695
        %v244 = vpow.pop %v243
        %v245 = vld [vmem:[#allocation3] sm:$0xff]
        %v246 = vmul.f32 %v244, %v245
        %248 = vset.pattern.permute.xlu0 0
        %249 = vperm.xlu0 %248, %v241
        %v250 = vpop.permute.xlu0 %249
        %v252 = vsub.f32 %v223, %v250
        %v253 = vmul.f32 %v252, 1.442695
        %v254 = vpow.pop %v253
        %255 = vadd.xlane.f32.xlu0 %v254
        %v256 = vpop.xlane.xlu0 %255
        %v257 = vadd.f32 %v246, %v256
        %vm258 = vcmask 7168
        %259 = vst.msk [vmem:[#allocation3] sm:$0xff] %vm258, %v257
        %260 = vst.msk [vmem:[#allocation2] sm:$0xff] %vm258, %v241
      $region36: #{tpu_custom_call.1} parent=27 // pred_fallthru
        _
      %p261 = scmp.eq.s32.totalorder %s19, 1
      // Predicated region
      $region37: #{tpu_custom_call.1} parent=27 // pred_check
        %p262 = pneg %p261
      $region38: #{tpu_custom_call.1} parent=27 // pred_check_branch
        %264 = sbr.rel (%p262) target = $region40
      $region39: #{tpu_custom_call.1} parent=27 // pred_region
        %v265 = vld [vmem:[#allocation3] sm:$0xff]
        %v266 = vrcp.pop %v265
        %v267 = vld [vmem:[#allocation2] sm:$0xff]
        %269 = vset.pattern.permute.xlu0 0
        %270 = vperm.xlu0 %269, %v267
        %v271 = vpop.permute.xlu0 %270
        %v273 = vsub.f32 %v223, %v271
        %v274 = vmul.f32 %v273, 1.442695
        %v275 = vpow.pop %v274
        %277 = vset.pattern.permute.xlu0 0
        %278 = vperm.xlu0 %277, %v266
        %v279 = vpop.permute.xlu0 %278
        %v281 = vmul.f32 %v275, %v279
        %v282 = vpack.c.bf16 %v281, %v281
        %v284 = vmul.bf16 %v282, 1069105081
        %v285 = vpow.bf16.pop %v284
        %v286 = vunpack.c.l.bf16 %v285
        %v287 = vsel %vm199, %v286, 0.0
        %v288 = vld [vmem:[#allocation4] sm:$0xff]
        %289 = vadd.xlane.f32.xlu0 %v287
        %v290 = vpop.xlane.xlu0 %289
        %v291 = vadd.f32 %v288, %v290
        %vm292 = vcmask 7168
        %293 = vst.msk [vmem:[#allocation4] sm:$0xff] %vm292, %v291
        %v294 = vld [vmem:[#allocation5] sm:$0xff]
        %v295 = vsel %vm196, %v281, 0.0
        %296 = vadd.xlane.f32.xlu0 %v295
        %v297 = vpop.xlane.xlu0 %296
        %v298 = vadd.f32 %v294, %v297
        %299 = vst.msk [vmem:[#allocation5] sm:$0xff] %vm292, %v298
      $region40: #{tpu_custom_call.1} parent=27 // pred_fallthru
        _
      %p300 = pnand %p261, %p225
      %p301 = pneg %p300
      // Predicated region
      $region41: #{tpu_custom_call.1} parent=27 // pred_check
        _
      $region42: #{tpu_custom_call.1} parent=27 // pred_check_branch
        %303 = sbr.rel (%p300) target = $region44
      $region43: #{tpu_custom_call.1} parent=27 // pred_region
        %v304 = vld [vmem:[#allocation4] sm:$0xff]
        %v305 = vlog2.pop %v304
        %v306 = vmul.f32 %v305, 0.6931472
        %v307 = vld [vmem:[#allocation5] sm:$0xff]
        %v308 = vsub.f32 %v306, %v307
        %vm309 = vcmask 7168
        %310 = vst.msk [vmem:[%s185] sm:$0xff] %vm309, %v308
      $region44: #{tpu_custom_call.1} parent=27 // pred_fallthru
        _
      %p311 = scmp.lt.s32.totalorder %s18, 0
      %s312 = scalar_select %p311, %s18, 0
      %s313 = smul.addr %s312, 8
      %s314 = scalar_lea.vmem %s2, %s313
      // Predicated region
      $region45: #{tpu_custom_call.1} parent=27 // pred_check
        %p315 = pneg %p104
      $region46: #{tpu_custom_call.1} parent=27 // pred_check_branch
        %317 = sbr.rel (%p315) target = $region48
      $region47: #{tpu_custom_call.1} parent=27 // pred_region
        _
      $region48: #{tpu_custom_call.1} parent=27 // pred_fallthru
        _
      // Predicated region
      $region49: #{tpu_custom_call.1} parent=27 // pred_check
        %p318 = pneg %p104
      $region50: #{tpu_custom_call.1} parent=27 // pred_check_branch
        %320 = sbr.rel (%p318) target = $region52
      $region51: #{tpu_custom_call.1} parent=27 // pred_region
        %p321 = scmp.lt.s32.totalorder %s18, 0
        %s322 = scalar_select %p321, %s18, 0
        %s323 = smul.addr %s322, 8
        %s324 = scalar_lea.vmem %s2, %s323
      $region52: #{tpu_custom_call.1} parent=27 // pred_fallthru
        _
    $region28: #{tpu_custom_call.1} parent=5 // pred_fallthru
      _
    %p325 = scmp.le.s32.totalorder 2, %s8
    // Predicated region
    $region53: #{tpu_custom_call.1} parent=5 // pred_check
      %p326 = pneg %p325
    $region54: #{tpu_custom_call.1} parent=5 // pred_check_branch
      %328 = sbr.rel (%p326) target = $region56
    $region55: #{tpu_custom_call.1} parent=5 // pred_region
      %s329 = ssub.s32 %s8, 2
    $region56: #{tpu_custom_call.1} parent=5 // pred_fallthru
      _
  $region6: #{tpu_custom_call.1} parent=0 // loop_footer
    %s12 = sadd.s32 1, %s8
  $region7: #{tpu_custom_call.1} parent=0 // loop_footer_branch
    %7 = sbr.rel target = $region3
  $region8: #{tpu_custom_call.1} parent=0 // loop_exit
    _

</llo_original>
